<compile_context>
chip_gen: v5e
topology: v5e:2x2
jax: 0.10.0
libtpu: 0.0.40
codegen_flags: <defaults>
</compile_context>

<pallas_src>
import jax
import jax.numpy as jnp
from jax import lax
from jax.experimental import pallas as pl
from jax.experimental.pallas import tpu as pltpu

IN_SHAPE = 16
PACK = 128 // IN_SHAPE           # 8 batch rows per packed 128-lane row
SUB = 64                         # packed rows per inner chunk = 512 batch rows
_DIMS = [(IN_SHAPE, 12), (12, 24), (24, 16), (16, 2)]

assert 128 % IN_SHAPE == 0


def _round_up(v, m):
    return (v + m - 1) // m * m


def _block_diag(w, reps):
    """(din, dout) -> (reps*din, reps*dout) block-diagonal tiling."""
    din, dout = w.shape
    m = jnp.zeros((reps * din, reps * dout), w.dtype)
    for j in range(reps):
        m = m.at[j * din:(j + 1) * din, j * dout:(j + 1) * dout].set(w)
    return m


def _pack_params(params):
    """Pre-pack the 4 Linear layers for the 8-rows-per-128-lane layout.

    Returns bf16 block-diagonal weights and f32 tiled biases.  The last layer
    is fused with the 2-class softmax: per packed sub-row j,
        col 2j   uses  w4[:,0]-w4[:,1]  ->  sigmoid = p0
        col 2j+1 uses  w4[:,1]-w4[:,0]  ->  sigmoid = p1
    (exact negations, so p0 + p1 == 1 to f32 rounding).
    """
    (w1, b1), (w2, b2), (w3, b3), (w4, b4) = params
    w4 = w4.astype(jnp.float32)
    b4 = b4.astype(jnp.float32)
    w4d = w4[:, 1:2] - w4[:, 0:1]                       # (16, 1)
    b4d = b4[:, 1:2] - b4[:, 0:1]                       # (1, 1)
    wd = jnp.concatenate([-w4d, w4d], axis=1)           # (16, 2)
    bd = jnp.concatenate([-b4d, b4d], axis=1)           # (1, 2)

    packed = []
    for w, b in ((w1, b1), (w2, b2), (w3, b3), (wd, bd)):
        packed.append(_block_diag(w.astype(jnp.float32), PACK).astype(jnp.bfloat16))
        packed.append(jnp.tile(b.astype(jnp.float32), (1, PACK)))
    return tuple(packed)


def _mlp_kernel(x_ref, w1_ref, b1_ref, w2_ref, b2_ref, w3_ref, b3_ref,
                w4_ref, b4_ref, o_ref):
    # x_ref: (tbp, 128) packed batch tile; weights/biases are whole (tiny)
    # arrays, VMEM-resident across grid steps via a constant index_map.
    # Inner loop over SUB packed rows (512 batch rows) keeps intermediates in
    # vregs instead of spilling whole-tile activations to VMEM.
    n_sub = x_ref.shape[0] // SUB        # static; tbp is a multiple of SUB

    def body(c, carry):
        r = pl.multiple_of(c * SUB, SUB)
        xb = x_ref[pl.ds(r, SUB), :].astype(jnp.bfloat16)
        h = jnp.dot(xb, w1_ref[...], preferred_element_type=jnp.float32) + b1_ref[...]
        h = jnp.maximum(h, 0.0).astype(jnp.bfloat16)
        h = jnp.dot(h, w2_ref[...], preferred_element_type=jnp.float32) + b2_ref[...]
        h = jnp.maximum(h, 0.0).astype(jnp.bfloat16)
        h = jnp.dot(h, w3_ref[...], preferred_element_type=jnp.float32) + b3_ref[...]
        h = jnp.maximum(h, 0.0).astype(jnp.bfloat16)
        # Fused fc4 + softmax(2): interleaved (p0, p1) pairs, lane-dense store.
        d = jnp.dot(h, w4_ref[...], preferred_element_type=jnp.float32) + b4_ref[...]
        o_ref[pl.ds(r, SUB), :] = 1.0 / (1.0 + jnp.exp(-d))
        return carry

    lax.fori_loop(0, n_sub, body, 0)


def simple_dnn_forward(x, params, *, block_rows=32768):
    """SimpleDNN forward.  x: any shape flattening to IN_SHAPE per row.
    Returns (N, 2) float32 softmax probabilities."""
    x2d = x.reshape(-1, IN_SHAPE)
    n = x2d.shape[0]

    n_rows = _round_up(n, PACK)          # minimal pad so rows pack into 128 lanes
    np_rows = n_rows // PACK

    if np_rows < SUB:
        # Tiny input: pad up to one inner chunk (cheap) so the tile divides evenly.
        np_rows, n_rows, tbp = SUB, SUB * PACK, SUB
    else:
        # Packed rows per grid step: multiple of SUB, never larger than the
        # array (so large inputs are never padded -> no extra HBM pass; the
        # partial last grid tile is masked by Pallas on writeback).
        want = _round_up(max(block_rows, SUB * PACK), SUB * PACK) // PACK
        tbp = min(want, (np_rows // SUB) * SUB)

    if n_rows != n:
        x2d = jnp.pad(x2d, ((0, n_rows - n), (0, 0)))
    xp = x2d.reshape(np_rows, 128)       # free reshape (row-major contiguous)

    packed = _pack_params(params)
    grid = (pl.cdiv(np_rows, tbp),)

    x_spec = pl.BlockSpec((tbp, 128), lambda i: (i, 0))
    out_spec = pl.BlockSpec((tbp, 2 * PACK), lambda i: (i, 0))
    w_specs = [pl.BlockSpec(p.shape, lambda i: (0, 0)) for p in packed]

    param_bytes = sum(int(p.size) * p.dtype.itemsize for p in packed)
    flops_per_row = 2 * sum(din * dout for din, dout in _DIMS)
    cost = pl.CostEstimate(
        flops=flops_per_row * n_rows,
        transcendentals=2 * n_rows,
        bytes_accessed=n_rows * (IN_SHAPE * x2d.dtype.itemsize + 2 * 4) + param_bytes,
    )

    out = pl.pallas_call(
        _mlp_kernel,
        out_shape=jax.ShapeDtypeStruct((np_rows, 2 * PACK), jnp.float32),
        grid=grid,
        in_specs=[x_spec] + w_specs,
        out_specs=out_spec,
        compiler_params=pltpu.CompilerParams(
            dimension_semantics=("parallel",),   # megacore sharding on v7x
            vmem_limit_bytes=32 * 1024 * 1024,   # actual use ~8 MiB; safe on all gens
        ),
        cost_estimate=cost,
    )(xp, *packed)

    out = out.reshape(n_rows, 2)         # free reshape back to row-major (N, 2)
    return out if n_rows == n else out[:n]


def init_params(key):
    """Deterministic init mirroring PyTorch Linear shapes.
    Weights kept as (in, out) = W^T of torch's (out, in); biases are (1, out)."""
    params = []
    for i, (din, dout) in enumerate(_DIMS):
        kw, kb = jax.random.split(jax.random.fold_in(key, i))
        bound = 1.0 / (din ** 0.5)
        w = jax.random.uniform(kw, (din, dout), jnp.float32, -bound, bound)
        b = jax.random.uniform(kb, (1, dout), jnp.float32, -bound, bound)
        params.append((w, b))
    return params


def reference_forward(x, params):
    h = x.reshape(-1, IN_SHAPE).astype(jnp.float32)
    for i, (w, b) in enumerate(params):
        h = h @ w + b
        if i < len(params) - 1:
            h = jax.nn.relu(h)
    return jax.nn.softmax(h, axis=-1)


if __name__ == "__main__":
    key = jax.random.PRNGKey(0)
    kx, kp = jax.random.split(key)
    params = init_params(kp)

    # Run 1: tiny batch (single grid step, zero-padded up to one inner chunk).
    x1 = jax.random.normal(kx, (16, IN_SHAPE), jnp.float32)
    out1 = simple_dnn_forward(x1, params)
    jax.block_until_ready(out1)
    assert out1.shape == (16, 2)
    assert jnp.allclose(jnp.sum(out1, axis=-1), 1.0, atol=1e-5)
    assert jnp.allclose(out1, reference_forward(x1, params), atol=2e-2)

    # Run 2: multi-step grid with a partial last tile (1200 rows, 512-row tiles).
    x2 = jax.random.normal(jax.random.fold_in(kx, 1), (1200, IN_SHAPE), jnp.float32)
    out2 = simple_dnn_forward(x2, params, block_rows=512)
    jax.block_until_ready(out2)
    assert out2.shape == (1200, 2)
    assert jnp.allclose(jnp.sum(out2, axis=-1), 1.0, atol=1e-5)
    assert jnp.allclose(out2, reference_forward(x2, params), atol=2e-2)

    # Run 3: batch not a multiple of 8 (exercises the minimal pad + slice path).
    x3 = jax.random.normal(jax.random.fold_in(kx, 2), (37, IN_SHAPE), jnp.float32)
    out3 = simple_dnn_forward(x3, params)
    jax.block_until_ready(out3)
    assert out3.shape == (37, 2)
    assert jnp.allclose(jnp.sum(out3, axis=-1), 1.0, atol=1e-5)
    assert jnp.allclose(out3, reference_forward(x3, params), atol=2e-2)

    print("KERNEL_OK")
</pallas_src>

<mosaic_0001>
module attributes {stable_mosaic.version = 11 : i64} {
  func.func @_mlp_kernel(%arg0: i32, %arg1: memref<64x128xf32, #tpu.memory_space<vmem>>, %arg2: memref<128x96xbf16, #tpu.memory_space<vmem>>, %arg3: memref<1x96xf32, #tpu.memory_space<vmem>>, %arg4: memref<96x192xbf16, #tpu.memory_space<vmem>>, %arg5: memref<1x192xf32, #tpu.memory_space<vmem>>, %arg6: memref<192x128xbf16, #tpu.memory_space<vmem>>, %arg7: memref<1x128xf32, #tpu.memory_space<vmem>>, %arg8: memref<128x16xbf16, #tpu.memory_space<vmem>>, %arg9: memref<1x16xf32, #tpu.memory_space<vmem>>, %arg10: memref<64x16xf32, #tpu.memory_space<vmem>>) attributes {dimension_semantics = [#tpu.dimension_semantics<parallel>], iteration_bounds = array<i64: 1>, scalar_prefetch = 0 : i64, scratch_operands = 0 : i64, tpu.core_type = #tpu.core_type<tc>, window_params = [{transform_indices = @transform_0, window_bounds = array<i64: 64, 128>}, {pipeline_mode = #tpu.pipeline_mode<synchronous>, transform_indices = @transform_1, window_bounds = array<i64: 128, 96>}, {pipeline_mode = #tpu.pipeline_mode<synchronous>, transform_indices = @transform_2, window_bounds = array<i64: 1, 96>}, {pipeline_mode = #tpu.pipeline_mode<synchronous>, transform_indices = @transform_3, window_bounds = array<i64: 96, 192>}, {pipeline_mode = #tpu.pipeline_mode<synchronous>, transform_indices = @transform_4, window_bounds = array<i64: 1, 192>}, {pipeline_mode = #tpu.pipeline_mode<synchronous>, transform_indices = @transform_5, window_bounds = array<i64: 192, 128>}, {pipeline_mode = #tpu.pipeline_mode<synchronous>, transform_indices = @transform_6, window_bounds = array<i64: 1, 128>}, {pipeline_mode = #tpu.pipeline_mode<synchronous>, transform_indices = @transform_7, window_bounds = array<i64: 128, 16>}, {pipeline_mode = #tpu.pipeline_mode<synchronous>, transform_indices = @transform_8, window_bounds = array<i64: 1, 16>}, {transform_indices = @transform_9, window_bounds = array<i64: 64, 16>}]} {
    %c0_i32 = arith.constant 0 : i32
    %c64_i32 = arith.constant 64 : i32
    %0 = arith.muli %c0_i32, %c64_i32 : i32
    %1 = tpu.assume_multiple %0, 64 : i32
    %2 = arith.index_cast %1 : i32 to index
    %c0 = arith.constant 0 : index
    %3 = vector.load %arg1[%2, %c0] : memref<64x128xf32, #tpu.memory_space<vmem>>, vector<64x128xf32>
    %4 = arith.truncf %3 : vector<64x128xf32> to vector<64x128xbf16>
    %c0_0 = arith.constant 0 : index
    %c0_1 = arith.constant 0 : index
    %5 = vector.load %arg2[%c0_0, %c0_1] : memref<128x96xbf16, #tpu.memory_space<vmem>>, vector<128x96xbf16>
    %cst = arith.constant dense<0.000000e+00> : vector<64x96xf32>
    %6 = tpu.matmul %4, %5, %cst {dimension_numbers = #tpu.dot_dimension_numbers<[1], [0], [0], [1], [0, 0, 1, 1], [], []>} : vector<64x128xbf16>, vector<128x96xbf16>, vector<64x96xf32> -> vector<64x96xf32>
    %c0_2 = arith.constant 0 : index
    %c0_3 = arith.constant 0 : index
    %7 = vector.load %arg3[%c0_2, %c0_3] : memref<1x96xf32, #tpu.memory_space<vmem>>, vector<1x96xf32>
    %8 = vector.broadcast %7 : vector<1x96xf32> to vector<64x96xf32>
    %9 = arith.addf %6, %8 : vector<64x96xf32>
    %cst_4 = arith.constant 0.000000e+00 : f32
    %10 = vector.broadcast %cst_4 : f32 to vector<64x96xf32>
    %11 = arith.maximumf %9, %10 : vector<64x96xf32>
    %12 = arith.truncf %11 : vector<64x96xf32> to vector<64x96xbf16>
    %c0_5 = arith.constant 0 : index
    %c0_6 = arith.constant 0 : index
    %13 = vector.load %arg4[%c0_5, %c0_6] : memref<96x192xbf16, #tpu.memory_space<vmem>>, vector<96x192xbf16>
    %cst_7 = arith.constant dense<0.000000e+00> : vector<64x192xf32>
    %14 = tpu.matmul %12, %13, %cst_7 {dimension_numbers = #tpu.dot_dimension_numbers<[1], [0], [0], [1], [0, 0, 1, 1], [], []>} : vector<64x96xbf16>, vector<96x192xbf16>, vector<64x192xf32> -> vector<64x192xf32>
    %c0_8 = arith.constant 0 : index
    %c0_9 = arith.constant 0 : index
    %15 = vector.load %arg5[%c0_8, %c0_9] : memref<1x192xf32, #tpu.memory_space<vmem>>, vector<1x192xf32>
    %16 = vector.broadcast %15 : vector<1x192xf32> to vector<64x192xf32>
    %17 = arith.addf %14, %16 : vector<64x192xf32>
    %cst_10 = arith.constant 0.000000e+00 : f32
    %18 = vector.broadcast %cst_10 : f32 to vector<64x192xf32>
    %19 = arith.maximumf %17, %18 : vector<64x192xf32>
    %20 = arith.truncf %19 : vector<64x192xf32> to vector<64x192xbf16>
    %c0_11 = arith.constant 0 : index
    %c0_12 = arith.constant 0 : index
    %21 = vector.load %arg6[%c0_11, %c0_12] : memref<192x128xbf16, #tpu.memory_space<vmem>>, vector<192x128xbf16>
    %cst_13 = arith.constant dense<0.000000e+00> : vector<64x128xf32>
    %22 = tpu.matmul %20, %21, %cst_13 {dimension_numbers = #tpu.dot_dimension_numbers<[1], [0], [0], [1], [0, 0, 1, 1], [], []>} : vector<64x192xbf16>, vector<192x128xbf16>, vector<64x128xf32> -> vector<64x128xf32>
    %c0_14 = arith.constant 0 : index
    %c0_15 = arith.constant 0 : index
    %23 = vector.load %arg7[%c0_14, %c0_15] : memref<1x128xf32, #tpu.memory_space<vmem>>, vector<1x128xf32>
    %24 = vector.broadcast %23 : vector<1x128xf32> to vector<64x128xf32>
    %25 = arith.addf %22, %24 : vector<64x128xf32>
    %cst_16 = arith.constant 0.000000e+00 : f32
    %26 = vector.broadcast %cst_16 : f32 to vector<64x128xf32>
    %27 = arith.maximumf %25, %26 : vector<64x128xf32>
    %28 = arith.truncf %27 : vector<64x128xf32> to vector<64x128xbf16>
    %c0_17 = arith.constant 0 : index
    %c0_18 = arith.constant 0 : index
    %29 = vector.load %arg8[%c0_17, %c0_18] : memref<128x16xbf16, #tpu.memory_space<vmem>>, vector<128x16xbf16>
    %cst_19 = arith.constant dense<0.000000e+00> : vector<64x16xf32>
    %30 = tpu.matmul %28, %29, %cst_19 {dimension_numbers = #tpu.dot_dimension_numbers<[1], [0], [0], [1], [0, 0, 1, 1], [], []>} : vector<64x128xbf16>, vector<128x16xbf16>, vector<64x16xf32> -> vector<64x16xf32>
    %c0_20 = arith.constant 0 : index
    %c0_21 = arith.constant 0 : index
    %31 = vector.load %arg9[%c0_20, %c0_21] : memref<1x16xf32, #tpu.memory_space<vmem>>, vector<1x16xf32>
    %32 = vector.broadcast %31 : vector<1x16xf32> to vector<64x16xf32>
    %33 = arith.addf %30, %32 : vector<64x16xf32>
    %cst_22 = arith.constant 0.000000e+00 : f32
    %34 = vector.broadcast %cst_22 : f32 to vector<64x16xf32>
    %35 = arith.subf %34, %33 : vector<64x16xf32>
    %36 = math.exp %35 : vector<64x16xf32>
    %cst_23 = arith.constant 1.000000e+00 : f32
    %37 = vector.broadcast %cst_23 : f32 to vector<64x16xf32>
    %38 = arith.addf %37, %36 : vector<64x16xf32>
    %cst_24 = arith.constant 1.000000e+00 : f32
    %39 = vector.broadcast %cst_24 : f32 to vector<64x16xf32>
    %40 = arith.divf %39, %38 : vector<64x16xf32>
    %41 = arith.index_cast %1 : i32 to index
    %c0_25 = arith.constant 0 : index
    %42 = vector.load %arg10[%41, %c0_25] : memref<64x16xf32, #tpu.memory_space<vmem>>, vector<64x16xf32>
    tpu.vector_store %arg10[%41, %c0_25], %40 {strides = array<i32>} : memref<64x16xf32, #tpu.memory_space<vmem>>, vector<64x16xf32>,
    %c1_i32 = arith.constant 1 : i32
    return
  }
  func.func @transform_0(%arg0: i32) -> (i32, i32) {
    %c0_i32 = arith.constant 0 : i32
    %c0_i32_0 = arith.constant 0 : i32
    return %arg0, %c0_i32 : i32, i32
  }
  func.func @transform_1(%arg0: i32) -> (i32, i32) {
    %c0_i32 = arith.constant 0 : i32
    %c0_i32_0 = arith.constant 0 : i32
    %c0_i32_1 = arith.constant 0 : i32
    return %c0_i32, %c0_i32_0 : i32, i32
  }
  func.func @transform_2(%arg0: i32) -> (i32, i32) {
    %c0_i32 = arith.constant 0 : i32
    %c0_i32_0 = arith.constant 0 : i32
    %c0_i32_1 = arith.constant 0 : i32
    return %c0_i32, %c0_i32_0 : i32, i32
  }
  func.func @transform_3(%arg0: i32) -> (i32, i32) {
    %c0_i32 = arith.constant 0 : i32
    %c0_i32_0 = arith.constant 0 : i32
    %c0_i32_1 = arith.constant 0 : i32
    return %c0_i32, %c0_i32_0 : i32, i32
  }
  func.func @transform_4(%arg0: i32) -> (i32, i32) {
    %c0_i32 = arith.constant 0 : i32
    %c0_i32_0 = arith.constant 0 : i32
    %c0_i32_1 = arith.constant 0 : i32
    return %c0_i32, %c0_i32_0 : i32, i32
  }
  func.func @transform_5(%arg0: i32) -> (i32, i32) {
    %c0_i32 = arith.constant 0 : i32
    %c0_i32_0 = arith.constant 0 : i32
    %c0_i32_1 = arith.constant 0 : i32
    return %c0_i32, %c0_i32_0 : i32, i32
  }
  func.func @transform_6(%arg0: i32) -> (i32, i32) {
    %c0_i32 = arith.constant 0 : i32
    %c0_i32_0 = arith.constant 0 : i32
    %c0_i32_1 = arith.constant 0 : i32
    return %c0_i32, %c0_i32_0 : i32, i32
  }
  func.func @transform_7(%arg0: i32) -> (i32, i32) {
    %c0_i32 = arith.constant 0 : i32
    %c0_i32_0 = arith.constant 0 : i32
    %c0_i32_1 = arith.constant 0 : i32
    return %c0_i32, %c0_i32_0 : i32, i32
  }
  func.func @transform_8(%arg0: i32) -> (i32, i32) {
    %c0_i32 = arith.constant 0 : i32
    %c0_i32_0 = arith.constant 0 : i32
    %c0_i32_1 = arith.constant 0 : i32
    return %c0_i32, %c0_i32_0 : i32, i32
  }
  func.func @transform_9(%arg0: i32) -> (i32, i32) {
    %c0_i32 = arith.constant 0 : i32
    %c0_i32_0 = arith.constant 0 : i32
    return %arg0, %c0_i32 : i32, i32
  }
}

</mosaic_0001>

<llo_original>
// kernel: tpu_custom_call.1
$region0: #{tpu_custom_call.1}
  #allocation0 [shape = 'u32[]', space=smem, size = 0x4, offset = 0x4, fixed_abs, tag = 'smem constant byte address 0x4 - core index']
  #allocation1 [shape = 'u32[72,128]{1,0:T(1,128)}', space=vmem, size = 0x9000, scoped, tag = 'internal scratch']
  %s0 = inlined_call_operand.vmem [shape: f32[64,128], index: 0, kind: input, shape index: {}]
  %s1 = inlined_call_operand.vmem [shape: bf16[128,96], index: 1, kind: input, shape index: {}]
  %s2 = inlined_call_operand.vmem [shape: f32[1,96], index: 2, kind: input, shape index: {}]
  %s3 = inlined_call_operand.vmem [shape: bf16[96,192], index: 3, kind: input, shape index: {}]
  %s4 = inlined_call_operand.vmem [shape: f32[1,192], index: 4, kind: input, shape index: {}]
  %s5 = inlined_call_operand.hbm [shape: bf16[192,128], index: 5, kind: input, shape index: {}]
  %s6 = inlined_call_operand.vmem [shape: f32[1,128], index: 6, kind: input, shape index: {}]
  %s7 = inlined_call_operand.vmem [shape: bf16[128,16], index: 7, kind: input, shape index: {}]
  %s8 = inlined_call_operand.vmem [shape: f32[1,16], index: 8, kind: input, shape index: {}]
  %s9 = inlined_call_operand.vmem [shape: f32[64,16], index: 9, kind: output, shape index: {}]
  %s10 = sld [smem:[#allocation0]]
  $region50: #{tpu_custom_call.1} parent=0
    _
  %s12 = ssub.s32 1, %s10
  %s13 = scalar_select 0, %s12, %s10
  $region1: #{tpu_custom_call.1} parent=0
    #allocation2 [shape = 'u8[49152]{0}', space=vmem, size = 0xc000, scoped, tag = 'input window, operand 5, single buffered']
    #allocation3 [shape = 's32[1]{0}', space=sflag, size = 0x4, scoped, tag = 'scoped memory for tpu_custom_call.1']
    %14 = vsyncpa [#allocation3], 0
    // Predicated region
    $region2: #{tpu_custom_call.1} parent=1 // pred_check
      _
    $region3: #{tpu_custom_call.1} parent=1 // pred_check_branch
      %16 = sbr.rel (0) target = $region5
    $region4: #{tpu_custom_call.1} parent=1 // pred_region
      _
    $region5: #{tpu_custom_call.1} parent=1 // pred_fallthru
      _
    // Predicated region
    $region6: #{tpu_custom_call.1} parent=1 // pred_check
      _
    $region7: #{tpu_custom_call.1} parent=1 // pred_check_branch
      %18 = sbr.rel (0) target = $region9
    $region8: #{tpu_custom_call.1} parent=1 // pred_region
      _
    $region9: #{tpu_custom_call.1} parent=1 // pred_fallthru
      _
    // Predicated region
    $region10: #{tpu_custom_call.1} parent=1 // pred_check
      _
    $region11: #{tpu_custom_call.1} parent=1 // pred_check_branch
      %20 = sbr.rel (0) target = $region13
    $region12: #{tpu_custom_call.1} parent=1 // pred_region
      _
    $region13: #{tpu_custom_call.1} parent=1 // pred_fallthru
      _
    // Predicated region
    $region14: #{tpu_custom_call.1} parent=1 // pred_check
      _
    $region15: #{tpu_custom_call.1} parent=1 // pred_check_branch
      %22 = sbr.rel (0) target = $region17
    $region16: #{tpu_custom_call.1} parent=1 // pred_region
      _
    $region17: #{tpu_custom_call.1} parent=1 // pred_fallthru
      _
    // Predicated region
    $region18: #{tpu_custom_call.1} parent=1 // pred_check
      _
    $region19: #{tpu_custom_call.1} parent=1 // pred_check_branch
      %24 = sbr.rel (0) target = $region21
    $region20: #{tpu_custom_call.1} parent=1 // pred_region
      _
    $region21: #{tpu_custom_call.1} parent=1 // pred_fallthru
      _
    // Predicated region
    $region22: #{tpu_custom_call.1} parent=1 // pred_check
      _
    $region23: #{tpu_custom_call.1} parent=1 // pred_check_branch
      %26 = sbr.rel (0) target = $region25
    $region24: #{tpu_custom_call.1} parent=1 // pred_region
      %28 = vsyncadd [#allocation3], 0
      %s29 = sshll.u32 %s5, 4
      %s30 = int_to_ptr.hbm [resolvable:$true] %s29
      %s31 = sshll.u32 [#allocation2], 4
      %s32 = int_to_ptr.vmem [resolvable:$true] %s31
      %37 = dma.hbm_to_vmem [thread:$0]  %s30, 1536, %s32, [#allocation3], 64, 64, 4
    $region25: #{tpu_custom_call.1} parent=1 // pred_fallthru
      _
    // Predicated region
    $region26: #{tpu_custom_call.1} parent=1 // pred_check
      _
    $region27: #{tpu_custom_call.1} parent=1 // pred_check_branch
      %39 = sbr.rel (0) target = $region29
    $region28: #{tpu_custom_call.1} parent=1 // pred_region
      _
    $region29: #{tpu_custom_call.1} parent=1 // pred_fallthru
      _
    // Predicated region
    $region30: #{tpu_custom_call.1} parent=1 // pred_check
      _
    $region31: #{tpu_custom_call.1} parent=1 // pred_check_branch
      %41 = sbr.rel (0) target = $region33
    $region32: #{tpu_custom_call.1} parent=1 // pred_region
      _
    $region33: #{tpu_custom_call.1} parent=1 // pred_fallthru
      _
    // Predicated region
    $region34: #{tpu_custom_call.1} parent=1 // pred_check
      _
    $region35: #{tpu_custom_call.1} parent=1 // pred_check_branch
      %43 = sbr.rel (0) target = $region37
    $region36: #{tpu_custom_call.1} parent=1 // pred_region
      _
    $region37: #{tpu_custom_call.1} parent=1 // pred_fallthru
      _
    // Predicated region
    $region38: #{tpu_custom_call.1} parent=1 // pred_check
      _
    $region39: #{tpu_custom_call.1} parent=1 // pred_check_branch
      %45 = sbr.rel (0) target = $region41
    $region40: #{tpu_custom_call.1} parent=1 // pred_region
      %47 = dma.done [#allocation3], 1536
    $region41: #{tpu_custom_call.1} parent=1 // pred_fallthru
      _
    %v49 = vld [vmem:[%s0] sm:$0xff]
    %v50 = vld [vmem:[%s0 + $0x8] sm:$0xff]
    %v51 = vld [vmem:[%s0 + $0x10] sm:$0xff]
    %v52 = vld [vmem:[%s0 + $0x18] sm:$0xff]
    %v53 = vld [vmem:[%s0 + $0x20] sm:$0xff]
    %v54 = vld [vmem:[%s0 + $0x28] sm:$0xff]
    %v55 = vld [vmem:[%s0 + $0x30] sm:$0xff]
    %v56 = vld [vmem:[%s0 + $0x38] sm:$0xff]
    %v57 = vpack.c.bf16 %v50, %v49
    %v58 = vpack.c.bf16 %v52, %v51
    %v59 = vpack.c.bf16 %v54, %v53
    %v60 = vpack.c.bf16 %v56, %v55
    %v61 = vld [vmem:[%s1] sm:$0xf]
    %v62 = vld [vmem:[%s1 + $0x4] sm:$0xf]
    %v63 = vld [vmem:[%s1 + $0x8] sm:$0xf]
    %v64 = vld [vmem:[%s1 + $0xc] sm:$0xf]
    %v65 = vld [vmem:[%s1 + $0x10] sm:$0xf]
    %v66 = vld [vmem:[%s1 + $0x14] sm:$0xf]
    %v67 = vld [vmem:[%s1 + $0x18] sm:$0xf]
    %v68 = vld [vmem:[%s1 + $0x1c] sm:$0xf]
    %v69 = vld [vmem:[%s1 + $0x20] sm:$0xf]
    %v70 = vld [vmem:[%s1 + $0x24] sm:$0xf]
    %v71 = vld [vmem:[%s1 + $0x28] sm:$0xf]
    %v72 = vld [vmem:[%s1 + $0x2c] sm:$0xf]
    %v73 = vld [vmem:[%s1 + $0x30] sm:$0xf]
    %v74 = vld [vmem:[%s1 + $0x34] sm:$0xf]
    %v75 = vld [vmem:[%s1 + $0x38] sm:$0xf]
    %v76 = vld [vmem:[%s1 + $0x3c] sm:$0xf]
    %v77 = vld [vmem:[%s2] sm:$0x1]
    %v79 = vperm.slane %v77, 0
    %v97 = vunpack.c.l.b16 %v61
    %v98 = vunpack.c.l.b16 %v62
    %v99 = vunpack.c.l.b16 %v63
    %v100 = vunpack.c.l.b16 %v64
    %v101 = vunpack.c.l.b16 %v65
    %v102 = vunpack.c.l.b16 %v66
    %v103 = vunpack.c.l.b16 %v67
    %v104 = vunpack.c.l.b16 %v68
    %v105 = vunpack.c.l.b16 %v69
    %v106 = vunpack.c.l.b16 %v70
    %v107 = vunpack.c.l.b16 %v71
    %v108 = vunpack.c.l.b16 %v72
    %v109 = vunpack.c.l.b16 %v73
    %v110 = vunpack.c.l.b16 %v74
    %v111 = vunpack.c.l.b16 %v75
    %v112 = vunpack.c.l.b16 %v76
    %v113 = vpack.c.b16 %v98, %v97
    %v114 = vpack.c.b16 %v100, %v99
    %v115 = vpack.c.b16 %v102, %v101
    %v116 = vpack.c.b16 %v104, %v103
    %v117 = vpack.c.b16 %v106, %v105
    %v118 = vpack.c.b16 %v108, %v107
    %v119 = vpack.c.b16 %v110, %v109
    %v120 = vpack.c.b16 %v112, %v111
    %129 = vmatpush.bf16.msra.mxu0 %v120
    %130 = vmatpush.bf16.msra.mxu0 %v119
    %131 = vmatpush.bf16.msra.mxu0 %v118
    %132 = vmatpush.bf16.msra.mxu0 %v117
    %133 = vmatpush.bf16.msra.mxu0 %v116
    %134 = vmatpush.bf16.msra.mxu0 %v115
    %135 = vmatpush.bf16.msra.mxu0 %v114
    %136 = vmatpush.bf16.msra.mxu0 %v113
    %137 = vmatmul.bf16.gmra.mxu0 %v57
    %v138 = vpop.f32.mrf.mxu0
    %v139 = vadd.f32 %v79, %v138
    %v140 = vpop.f32.mrf.mxu0
    %v141 = vadd.f32 %v79, %v140
    %142 = vmatmul.bf16.gmra.mxu0 %v58
    %v143 = vpop.f32.mrf.mxu0
    %v144 = vadd.f32 %v79, %v143
    %v145 = vpop.f32.mrf.mxu0
    %v146 = vadd.f32 %v79, %v145
    %147 = vmatmul.bf16.gmra.mxu0 %v59
    %v148 = vpop.f32.mrf.mxu0
    %v149 = vadd.f32 %v79, %v148
    %v150 = vpop.f32.mrf.mxu0
    %v151 = vadd.f32 %v79, %v150
    %152 = vmatmul.bf16.gmra.mxu0 %v60
    %v153 = vpop.f32.mrf.mxu0
    %v154 = vadd.f32 %v79, %v153
    %v155 = vpop.f32.mrf.mxu0
    %v156 = vadd.f32 %v79, %v155
    %157 = vdwg.mxu0
    %v158 = vmax.f32 %v139, 0.0
    %v159 = vmax.f32 %v141, 0.0
    %v160 = vmax.f32 %v144, 0.0
    %v161 = vmax.f32 %v146, 0.0
    %v162 = vmax.f32 %v149, 0.0
    %v163 = vmax.f32 %v151, 0.0
    %v164 = vmax.f32 %v154, 0.0
    %v165 = vmax.f32 %v156, 0.0
    %v166 = vpack.c.bf16 %v159, %v158
    %v167 = vpack.c.bf16 %v161, %v160
    %v168 = vpack.c.bf16 %v163, %v162
    %v169 = vpack.c.bf16 %v165, %v164
    %v170 = vld [vmem:[%s3] sm:$0xff]
    %v171 = vld [vmem:[%s3 + $0x8] sm:$0xff]
    %v172 = vld [vmem:[%s3 + $0x10] sm:$0xff]
    %v173 = vld [vmem:[%s3 + $0x18] sm:$0xff]
    %v174 = vld [vmem:[%s3 + $0x20] sm:$0xff]
    %v175 = vld [vmem:[%s3 + $0x28] sm:$0xff]
    %v176 = vld [vmem:[%s3 + $0x30] sm:$0xff]
    %v177 = vld [vmem:[%s3 + $0x38] sm:$0xff]
    %v178 = vld [vmem:[%s3 + $0x40] sm:$0xff]
    %v179 = vld [vmem:[%s3 + $0x48] sm:$0xff]
    %v180 = vld [vmem:[%s3 + $0x50] sm:$0xff]
    %v181 = vld [vmem:[%s3 + $0x58] sm:$0xff]
    %v182 = vld [vmem:[%s4] sm:$0x3]
    %v184 = vperm.slane %v182, 0
    %v185 = vperm.slane %v182, 1
    %v200 = vunpack.c.l.b16 %v170
    %v201 = vunpack.c.h.b16 %v170
    %v202 = vunpack.c.l.b16 %v171
    %v203 = vunpack.c.h.b16 %v171
    %v204 = vunpack.c.l.b16 %v172
    %v205 = vunpack.c.h.b16 %v172
    %v206 = vunpack.c.l.b16 %v173
    %v207 = vunpack.c.h.b16 %v173
    %v208 = vunpack.c.l.b16 %v174
    %v209 = vunpack.c.h.b16 %v174
    %v210 = vunpack.c.l.b16 %v175
    %v211 = vunpack.c.h.b16 %v175
    %v212 = vunpack.c.l.b16 %v176
    %v213 = vunpack.c.h.b16 %v176
    %v214 = vunpack.c.l.b16 %v177
    %v215 = vunpack.c.h.b16 %v177
    %v216 = vunpack.c.l.b16 %v178
    %v217 = vunpack.c.h.b16 %v178
    %v218 = vunpack.c.l.b16 %v179
    %v219 = vunpack.c.h.b16 %v179
    %v220 = vunpack.c.l.b16 %v180
    %v221 = vunpack.c.h.b16 %v180
    %v222 = vunpack.c.l.b16 %v181
    %v223 = vunpack.c.h.b16 %v181
    %v224 = vpack.c.b16 %v202, %v200
    %v225 = vpack.c.b16 %v203, %v201
    %v226 = vpack.c.b16 %v206, %v204
    %v227 = vpack.c.b16 %v207, %v205
    %v228 = vpack.c.b16 %v210, %v208
    %v229 = vpack.c.b16 %v211, %v209
    %v230 = vpack.c.b16 %v214, %v212
    %v231 = vpack.c.b16 %v215, %v213
    %v232 = vpack.c.b16 %v218, %v216
    %v233 = vpack.c.b16 %v219, %v217
    %v234 = vpack.c.b16 %v222, %v220
    %v235 = vpack.c.b16 %v223, %v221
    %vm248 = vcmask 785408
    %v250 = vsel %vm248, %v166, 0
    %v253 = vsel %vm248, %v167, 0
    %v256 = vsel %vm248, %v168, 0
    %v259 = vsel %vm248, %v169, 0
    %261 = vmatpush.bf16.msra.mxu0 0
    %262 = vmatpush.bf16.msra.mxu0 0
    %263 = vmatpush.bf16.msra.mxu0 %v234
    %264 = vmatpush.bf16.msra.mxu0 %v232
    %265 = vmatpush.bf16.msra.mxu0 %v230
    %266 = vmatpush.bf16.msra.mxu0 %v228
    %267 = vmatpush.bf16.msra.mxu0 %v226
    %268 = vmatpush.bf16.msra.mxu0 %v224
    %269 = vmatmul.bf16.gmra.mxu0 %v250
    %v270 = vpop.f32.mrf.mxu0
    %v271 = vadd.f32 %v184, %v270
    %v272 = vpop.f32.mrf.mxu0
    %v273 = vadd.f32 %v184, %v272
    %274 = vmatmul.bf16.gmra.mxu0 %v253
    %v275 = vpop.f32.mrf.mxu0
    %v276 = vadd.f32 %v184, %v275
    %v277 = vpop.f32.mrf.mxu0
    %v278 = vadd.f32 %v184, %v277
    %279 = vmatmul.bf16.gmra.mxu0 %v256
    %v280 = vpop.f32.mrf.mxu0
    %v281 = vadd.f32 %v184, %v280
    %v282 = vpop.f32.mrf.mxu0
    %v283 = vadd.f32 %v184, %v282
    %284 = vmatmul.bf16.gmra.mxu0 %v259
    %v285 = vpop.f32.mrf.mxu0
    %v286 = vadd.f32 %v184, %v285
    %v287 = vpop.f32.mrf.mxu0
    %v288 = vadd.f32 %v184, %v287
    %289 = vdwg.mxu0
    %290 = vmatpush.bf16.msra.mxu0 0
    %291 = vmatpush.bf16.msra.mxu0 0
    %292 = vmatpush.bf16.msra.mxu0 %v235
    %293 = vmatpush.bf16.msra.mxu0 %v233
    %294 = vmatpush.bf16.msra.mxu0 %v231
    %295 = vmatpush.bf16.msra.mxu0 %v229
    %296 = vmatpush.bf16.msra.mxu0 %v227
    %297 = vmatpush.bf16.msra.mxu0 %v225
    %298 = vmatmul.bf16.gmra.mxu0 %v250
    %v299 = vpop.f32.mrf.mxu0
    %v300 = vadd.f32 %v185, %v299
    %v301 = vpop.f32.mrf.mxu0
    %v302 = vadd.f32 %v185, %v301
    %303 = vmatmul.bf16.gmra.mxu0 %v253
    %v304 = vpop.f32.mrf.mxu0
    %v305 = vadd.f32 %v185, %v304
    %v306 = vpop.f32.mrf.mxu0
    %v307 = vadd.f32 %v185, %v306
    %308 = vmatmul.bf16.gmra.mxu0 %v256
    %v309 = vpop.f32.mrf.mxu0
    %v310 = vadd.f32 %v185, %v309
    %v311 = vpop.f32.mrf.mxu0
    %v312 = vadd.f32 %v185, %v311
    %313 = vmatmul.bf16.gmra.mxu0 %v259
    %v314 = vpop.f32.mrf.mxu0
    %v315 = vadd.f32 %v185, %v314
    %v316 = vpop.f32.mrf.mxu0
    %v317 = vadd.f32 %v185, %v316
    %318 = vdwg.mxu0
    %v319 = vmax.f32 %v271, 0.0
    %v320 = vmax.f32 %v300, 0.0
    %v321 = vmax.f32 %v273, 0.0
    %v322 = vmax.f32 %v302, 0.0
    %v323 = vmax.f32 %v276, 0.0
    %v324 = vmax.f32 %v305, 0.0
    %v325 = vmax.f32 %v278, 0.0
    %v326 = vmax.f32 %v307, 0.0
    %v327 = vmax.f32 %v281, 0.0
    %v328 = vmax.f32 %v310, 0.0
    %v329 = vmax.f32 %v283, 0.0
    %v330 = vmax.f32 %v312, 0.0
    %v331 = vmax.f32 %v286, 0.0
    %v332 = vmax.f32 %v315, 0.0
    %v333 = vmax.f32 %v288, 0.0
    %v334 = vmax.f32 %v317, 0.0
    %v335 = vpack.c.bf16 %v321, %v319
    %v336 = vpack.c.bf16 %v322, %v320
    %v337 = vpack.c.bf16 %v325, %v323
    %v338 = vpack.c.bf16 %v326, %v324
    %v339 = vpack.c.bf16 %v329, %v327
    %v340 = vpack.c.bf16 %v330, %v328
    %v341 = vpack.c.bf16 %v333, %v331
    %v342 = vpack.c.bf16 %v334, %v332
    %v343 = vld [vmem:[#allocation2] sm:$0xf]
    %v344 = vld [vmem:[#allocation2 + $0x4] sm:$0xf]
    %v345 = vld [vmem:[#allocation2 + $0x8] sm:$0xf]
    %v346 = vld [vmem:[#allocation2 + $0xc] sm:$0xf]
    %v347 = vld [vmem:[#allocation2 + $0x10] sm:$0xf]
    %v348 = vld [vmem:[#allocation2 + $0x14] sm:$0xf]
    %v349 = vld [vmem:[#allocation2 + $0x18] sm:$0xf]
    %v350 = vld [vmem:[#allocation2 + $0x1c] sm:$0xf]
    %v351 = vld [vmem:[#allocation2 + $0x20] sm:$0xf]
    %v352 = vld [vmem:[#allocation2 + $0x24] sm:$0xf]
    %v353 = vld [vmem:[#allocation2 + $0x28] sm:$0xf]
    %v354 = vld [vmem:[#allocation2 + $0x2c] sm:$0xf]
    %v355 = vld [vmem:[#allocation2 + $0x30] sm:$0xf]
    %v356 = vld [vmem:[#allocation2 + $0x34] sm:$0xf]
    %v357 = vld [vmem:[#allocation2 + $0x38] sm:$0xf]
    %v358 = vld [vmem:[#allocation2 + $0x3c] sm:$0xf]
    %v359 = vld [vmem:[#allocation2 + $0x40] sm:$0xf]
    %v360 = vld [vmem:[#allocation2 + $0x44] sm:$0xf]
    %v361 = vld [vmem:[#allocation2 + $0x48] sm:$0xf]
    %v362 = vld [vmem:[#allocation2 + $0x4c] sm:$0xf]
    %v363 = vld [vmem:[#allocation2 + $0x50] sm:$0xf]
    %v364 = vld [vmem:[#allocation2 + $0x54] sm:$0xf]
    %v365 = vld [vmem:[#allocation2 + $0x58] sm:$0xf]
    %v366 = vld [vmem:[#allocation2 + $0x5c] sm:$0xf]
    %v367 = vld [vmem:[%s6] sm:$0x1]
    %v369 = vperm.slane %v367, 0
    %v395 = vunpack.c.l.b16 %v343
    %v396 = vunpack.c.l.b16 %v344
    %v397 = vunpack.c.l.b16 %v345
    %v398 = vunpack.c.l.b16 %v346
    %v399 = vunpack.c.l.b16 %v347
    %v400 = vunpack.c.l.b16 %v348
    %v401 = vunpack.c.l.b16 %v349
    %v402 = vunpack.c.l.b16 %v350
    %v403 = vunpack.c.l.b16 %v351
    %v404 = vunpack.c.l.b16 %v352
    %v405 = vunpack.c.l.b16 %v353
    %v406 = vunpack.c.l.b16 %v354
    %v407 = vunpack.c.l.b16 %v355
    %v408 = vunpack.c.l.b16 %v356
    %v409 = vunpack.c.l.b16 %v357
    %v410 = vunpack.c.l.b16 %v358
    %v411 = vunpack.c.l.b16 %v359
    %v412 = vunpack.c.l.b16 %v360
    %v413 = vunpack.c.l.b16 %v361
    %v414 = vunpack.c.l.b16 %v362
    %v415 = vunpack.c.l.b16 %v363
    %v416 = vunpack.c.l.b16 %v364
    %v417 = vunpack.c.l.b16 %v365
    %v418 = vunpack.c.l.b16 %v366
    %v419 = vpack.c.b16 %v396, %v395
    %v420 = vpack.c.b16 %v398, %v397
    %v421 = vpack.c.b16 %v400, %v399
    %v422 = vpack.c.b16 %v402, %v401
    %v423 = vpack.c.b16 %v404, %v403
    %v424 = vpack.c.b16 %v406, %v405
    %v425 = vpack.c.b16 %v408, %v407
    %v426 = vpack.c.b16 %v410, %v409
    %v427 = vpack.c.b16 %v412, %v411
    %v428 = vpack.c.b16 %v414, %v413
    %v429 = vpack.c.b16 %v416, %v415
    %v430 = vpack.c.b16 %v418, %v417
    %vm443 = vcmask 523264
    %v445 = vsel %vm443, %v336, 0
    %v448 = vsel %vm443, %v338, 0
    %v451 = vsel %vm443, %v340, 0
    %v454 = vsel %vm443, %v342, 0
    %456 = vmatpush.bf16.msra.mxu0 %v426
    %457 = vmatpush.bf16.msra.mxu0 %v425
    %458 = vmatpush.bf16.msra.mxu0 %v424
    %459 = vmatpush.bf16.msra.mxu0 %v423
    %460 = vmatpush.bf16.msra.mxu0 %v422
    %461 = vmatpush.bf16.msra.mxu0 %v421
    %462 = vmatpush.bf16.msra.mxu0 %v420
    %463 = vmatpush.bf16.msra.mxu0 %v419
    %464 = vmatmul.bf16.gmra.mxu0 %v335
    %v465 = vpop.f32.mrf.mxu0
    %v466 = vadd.f32 %v369, %v465
    %v467 = vpop.f32.mrf.mxu0
    %v468 = vadd.f32 %v369, %v467
    %469 = vmatmul.bf16.gmra.mxu0 %v337
    %v470 = vpop.f32.mrf.mxu0
    %v471 = vadd.f32 %v369, %v470
    %v472 = vpop.f32.mrf.mxu0
    %v473 = vadd.f32 %v369, %v472
    %474 = vmatmul.bf16.gmra.mxu0 %v339
    %v475 = vpop.f32.mrf.mxu0
    %v476 = vadd.f32 %v369, %v475
    %v477 = vpop.f32.mrf.mxu0
    %v478 = vadd.f32 %v369, %v477
    %479 = vmatmul.bf16.gmra.mxu0 %v341
    %v480 = vpop.f32.mrf.mxu0
    %v481 = vadd.f32 %v369, %v480
    %v482 = vpop.f32.mrf.mxu0
    %v483 = vadd.f32 %v369, %v482
    %484 = vdwg.mxu0
    %485 = vmatpush.bf16.msra.mxu0 0
    %486 = vmatpush.bf16.msra.mxu0 0
    %487 = vmatpush.bf16.msra.mxu0 0
    %488 = vmatpush.bf16.msra.mxu0 0
    %489 = vmatpush.bf16.msra.mxu0 %v430
    %490 = vmatpush.bf16.msra.mxu0 %v429
    %491 = vmatpush.bf16.msra.mxu0 %v428
    %492 = vmatpush.bf16.msra.mxu0 %v427
    %493 = vmatmul.bf16.gmra.mxu0 %v445
    %v494 = vpop.f32.mrf.mxu0
    %v495 = vadd.f32 %v466, %v494
    %v496 = vpop.f32.mrf.mxu0
    %v497 = vadd.f32 %v468, %v496
    %498 = vmatmul.bf16.gmra.mxu0 %v448
    %v499 = vpop.f32.mrf.mxu0
    %v500 = vadd.f32 %v471, %v499
    %v501 = vpop.f32.mrf.mxu0
    %v502 = vadd.f32 %v473, %v501
    %503 = vmatmul.bf16.gmra.mxu0 %v451
    %v504 = vpop.f32.mrf.mxu0
    %v505 = vadd.f32 %v476, %v504
    %v506 = vpop.f32.mrf.mxu0
    %v507 = vadd.f32 %v478, %v506
    %508 = vmatmul.bf16.gmra.mxu0 %v454
    %v509 = vpop.f32.mrf.mxu0
    %v510 = vadd.f32 %v481, %v509
    %v511 = vpop.f32.mrf.mxu0
    %v512 = vadd.f32 %v483, %v511
    %513 = vdwg.mxu0
    %v514 = vmax.f32 %v495, 0.0
    %v515 = vmax.f32 %v497, 0.0
    %v516 = vmax.f32 %v500, 0.0
    %v517 = vmax.f32 %v502, 0.0
    %v518 = vmax.f32 %v505, 0.0
    %v519 = vmax.f32 %v507, 0.0
    %v520 = vmax.f32 %v510, 0.0
    %v521 = vmax.f32 %v512, 0.0
    %v522 = vpack.c.bf16 %v515, %v514
    %v523 = vpack.c.bf16 %v517, %v516
    %v524 = vpack.c.bf16 %v519, %v518
    %v525 = vpack.c.bf16 %v521, %v520
    %v526 = vld [vmem:[%s7] sm:$0xf]
    %v527 = vld [vmem:[%s7 + $0x4] sm:$0xf]
    %v528 = vld [vmem:[%s7 + $0x8] sm:$0xf]
    %v529 = vld [vmem:[%s7 + $0xc] sm:$0xf]
    %v530 = vld [vmem:[%s7 + $0x10] sm:$0xf]
    %v531 = vld [vmem:[%s7 + $0x14] sm:$0xf]
    %v532 = vld [vmem:[%s7 + $0x18] sm:$0xf]
    %v533 = vld [vmem:[%s7 + $0x1c] sm:$0xf]
    %v534 = vld [vmem:[%s7 + $0x20] sm:$0xf]
    %v535 = vld [vmem:[%s7 + $0x24] sm:$0xf]
    %v536 = vld [vmem:[%s7 + $0x28] sm:$0xf]
    %v537 = vld [vmem:[%s7 + $0x2c] sm:$0xf]
    %v538 = vld [vmem:[%s7 + $0x30] sm:$0xf]
    %v539 = vld [vmem:[%s7 + $0x34] sm:$0xf]
    %v540 = vld [vmem:[%s7 + $0x38] sm:$0xf]
    %v541 = vld [vmem:[%s7 + $0x3c] sm:$0xf]
    %v542 = vld [vmem:[%s8] sm:$0x1]
    %v544 = vperm.slane %v542, 0
    %v562 = vunpack.c.l.b16 %v526
    %v563 = vunpack.c.l.b16 %v527
    %v564 = vunpack.c.l.b16 %v528
    %v565 = vunpack.c.l.b16 %v529
    %v566 = vunpack.c.l.b16 %v530
    %v567 = vunpack.c.l.b16 %v531
    %v568 = vunpack.c.l.b16 %v532
    %v569 = vunpack.c.l.b16 %v533
    %v570 = vunpack.c.l.b16 %v534
    %v571 = vunpack.c.l.b16 %v535
    %v572 = vunpack.c.l.b16 %v536
    %v573 = vunpack.c.l.b16 %v537
    %v574 = vunpack.c.l.b16 %v538
    %v575 = vunpack.c.l.b16 %v539
    %v576 = vunpack.c.l.b16 %v540
    %v577 = vunpack.c.l.b16 %v541
    %v578 = vpack.c.b16 %v563, %v562
    %v579 = vpack.c.b16 %v565, %v564
    %v580 = vpack.c.b16 %v567, %v566
    %v581 = vpack.c.b16 %v569, %v568
    %v582 = vpack.c.b16 %v571, %v570
    %v583 = vpack.c.b16 %v573, %v572
    %v584 = vpack.c.b16 %v575, %v574
    %v585 = vpack.c.b16 %v577, %v576
    %594 = vmatpush.bf16.msra.mxu0 %v585
    %595 = vmatpush.bf16.msra.mxu0 %v584
    %596 = vmatpush.bf16.msra.mxu0 %v583
    %597 = vmatpush.bf16.msra.mxu0 %v582
    %598 = vmatpush.bf16.msra.mxu0 %v581
    %599 = vmatpush.bf16.msra.mxu0 %v580
    %600 = vmatpush.bf16.msra.mxu0 %v579
    %601 = vmatpush.bf16.msra.mxu0 %v578
    %602 = vmatmul.bf16.gmra.mxu0 %v522
    %v603 = vpop.f32.mrf.mxu0
    %v604 = vadd.f32 %v544, %v603
    %v605 = vpop.f32.mrf.mxu0
    %v606 = vadd.f32 %v544, %v605
    %607 = vmatmul.bf16.gmra.mxu0 %v523
    %v608 = vpop.f32.mrf.mxu0
    %v609 = vadd.f32 %v544, %v608
    %v610 = vpop.f32.mrf.mxu0
    %v611 = vadd.f32 %v544, %v610
    %612 = vmatmul.bf16.gmra.mxu0 %v524
    %v613 = vpop.f32.mrf.mxu0
    %v614 = vadd.f32 %v544, %v613
    %v615 = vpop.f32.mrf.mxu0
    %v616 = vadd.f32 %v544, %v615
    %617 = vmatmul.bf16.gmra.mxu0 %v525
    %v618 = vpop.f32.mrf.mxu0
    %v619 = vadd.f32 %v544, %v618
    %v620 = vpop.f32.mrf.mxu0
    %v621 = vadd.f32 %v544, %v620
    %622 = vdwg.mxu0
    %v623 = vsub.f32 0.0, %v604
    %v624 = vsub.f32 0.0, %v606
    %v625 = vsub.f32 0.0, %v609
    %v626 = vsub.f32 0.0, %v611
    %v627 = vsub.f32 0.0, %v614
    %v628 = vsub.f32 0.0, %v616
    %v629 = vsub.f32 0.0, %v619
    %v630 = vsub.f32 0.0, %v621
    %v631 = vmul.f32 %v623, 1.442695
    %v632 = vpow.pop %v631
    %v633 = vmul.f32 %v624, 1.442695
    %v634 = vpow.pop %v633
    %v635 = vmul.f32 %v625, 1.442695
    %v636 = vpow.pop %v635
    %v637 = vmul.f32 %v626, 1.442695
    %v638 = vpow.pop %v637
    %v639 = vmul.f32 %v627, 1.442695
    %v640 = vpow.pop %v639
    %v641 = vmul.f32 %v628, 1.442695
    %v642 = vpow.pop %v641
    %v643 = vmul.f32 %v629, 1.442695
    %v644 = vpow.pop %v643
    %v645 = vmul.f32 %v630, 1.442695
    %v646 = vpow.pop %v645
    %v647 = vadd.f32 %v632, 1.0
    %v648 = vadd.f32 %v634, 1.0
    %v649 = vadd.f32 %v636, 1.0
    %v650 = vadd.f32 %v638, 1.0
    %v651 = vadd.f32 %v640, 1.0
    %v652 = vadd.f32 %v642, 1.0
    %v653 = vadd.f32 %v644, 1.0
    %v654 = vadd.f32 %v646, 1.0
    %v655 = vrcp.pop %v647
    %v656 = vmul.f32 %v647, %v655
    %v657 = vsub.f32 1.0, %v656
    %v658 = vmul.f32 %v655, %v657
    %v659 = vadd.f32 %v655, %v658
    %vm660 = vweird.f32 %v647
    %vm661 = vweird.f32 %v655
    %vm662 = vmor %vm660, %vm661
    %v663 = vsel %vm662, %v655, %v659
    %v664 = vand.u32 2147483647, %v647
    %vm665 = vcmp.eq.f32.partialorder %v664, 8.507059e+37
    %v666 = vand.u32 %v647, 2147483648
    %v667 = vor.u32 1.1754944e-38, %v666
    %v668 = vsel %vm665, %v667, %v663
    %v669 = vmul.f32 1.0, %v668
    %v670 = vrcp.pop %v648
    %v671 = vmul.f32 %v648, %v670
    %v672 = vsub.f32 1.0, %v671
    %v673 = vmul.f32 %v670, %v672
    %v674 = vadd.f32 %v670, %v673
    %vm675 = vweird.f32 %v648
    %vm676 = vweird.f32 %v670
    %vm677 = vmor %vm675, %vm676
    %v678 = vsel %vm677, %v670, %v674
    %v679 = vand.u32 2147483647, %v648
    %vm680 = vcmp.eq.f32.partialorder %v679, 8.507059e+37
    %v681 = vand.u32 %v648, 2147483648
    %v682 = vor.u32 1.1754944e-38, %v681
    %v683 = vsel %vm680, %v682, %v678
    %v684 = vmul.f32 1.0, %v683
    %v685 = vrcp.pop %v649
    %v686 = vmul.f32 %v649, %v685
    %v687 = vsub.f32 1.0, %v686
    %v688 = vmul.f32 %v685, %v687
    %v689 = vadd.f32 %v685, %v688
    %vm690 = vweird.f32 %v649
    %vm691 = vweird.f32 %v685
    %vm692 = vmor %vm690, %vm691
    %v693 = vsel %vm692, %v685, %v689
    %v694 = vand.u32 2147483647, %v649
    %vm695 = vcmp.eq.f32.partialorder %v694, 8.507059e+37
    %v696 = vand.u32 %v649, 2147483648
    %v697 = vor.u32 1.1754944e-38, %v696
    %v698 = vsel %vm695, %v697, %v693
    %v699 = vmul.f32 1.0, %v698
    %v700 = vrcp.pop %v650
    %v701 = vmul.f32 %v650, %v700
    %v702 = vsub.f32 1.0, %v701
    %v703 = vmul.f32 %v700, %v702
    %v704 = vadd.f32 %v700, %v703
    %vm705 = vweird.f32 %v650
    %vm706 = vweird.f32 %v700
    %vm707 = vmor %vm705, %vm706
    %v708 = vsel %vm707, %v700, %v704
    %v709 = vand.u32 2147483647, %v650
    %vm710 = vcmp.eq.f32.partialorder %v709, 8.507059e+37
    %v711 = vand.u32 %v650, 2147483648
    %v712 = vor.u32 1.1754944e-38, %v711
    %v713 = vsel %vm710, %v712, %v708
    %v714 = vmul.f32 1.0, %v713
    %v715 = vrcp.pop %v651
    %v716 = vmul.f32 %v651, %v715
    %v717 = vsub.f32 1.0, %v716
    %v718 = vmul.f32 %v715, %v717
    %v719 = vadd.f32 %v715, %v718
    %vm720 = vweird.f32 %v651
    %vm721 = vweird.f32 %v715
    %vm722 = vmor %vm720, %vm721
    %v723 = vsel %vm722, %v715, %v719
    %v724 = vand.u32 2147483647, %v651
    %vm725 = vcmp.eq.f32.partialorder %v724, 8.507059e+37
    %v726 = vand.u32 %v651, 2147483648
    %v727 = vor.u32 1.1754944e-38, %v726
    %v728 = vsel %vm725, %v727, %v723
    %v729 = vmul.f32 1.0, %v728
    %v730 = vrcp.pop %v652
    %v731 = vmul.f32 %v652, %v730
    %v732 = vsub.f32 1.0, %v731
    %v733 = vmul.f32 %v730, %v732
    %v734 = vadd.f32 %v730, %v733
    %vm735 = vweird.f32 %v652
    %vm736 = vweird.f32 %v730
    %vm737 = vmor %vm735, %vm736
    %v738 = vsel %vm737, %v730, %v734
    %v739 = vand.u32 2147483647, %v652
    %vm740 = vcmp.eq.f32.partialorder %v739, 8.507059e+37
    %v741 = vand.u32 %v652, 2147483648
    %v742 = vor.u32 1.1754944e-38, %v741
    %v743 = vsel %vm740, %v742, %v738
    %v744 = vmul.f32 1.0, %v743
    %v745 = vrcp.pop %v653
    %v746 = vmul.f32 %v653, %v745
    %v747 = vsub.f32 1.0, %v746
    %v748 = vmul.f32 %v745, %v747
    %v749 = vadd.f32 %v745, %v748
    %vm750 = vweird.f32 %v653
    %vm751 = vweird.f32 %v745
    %vm752 = vmor %vm750, %vm751
    %v753 = vsel %vm752, %v745, %v749
    %v754 = vand.u32 2147483647, %v653
    %vm755 = vcmp.eq.f32.partialorder %v754, 8.507059e+37
    %v756 = vand.u32 %v653, 2147483648
    %v757 = vor.u32 1.1754944e-38, %v756
    %v758 = vsel %vm755, %v757, %v753
    %v759 = vmul.f32 1.0, %v758
    %v760 = vrcp.pop %v654
    %v761 = vmul.f32 %v654, %v760
    %v762 = vsub.f32 1.0, %v761
    %v763 = vmul.f32 %v760, %v762
    %v764 = vadd.f32 %v760, %v763
    %vm765 = vweird.f32 %v654
    %vm766 = vweird.f32 %v760
    %vm767 = vmor %vm765, %vm766
    %v768 = vsel %vm767, %v760, %v764
    %v769 = vand.u32 2147483647, %v654
    %vm770 = vcmp.eq.f32.partialorder %v769, 8.507059e+37
    %v771 = vand.u32 %v654, 2147483648
    %v772 = vor.u32 1.1754944e-38, %v771
    %v773 = vsel %vm770, %v772, %v768
    %v774 = vmul.f32 1.0, %v773
    %vm775 = vcmask 130048
    %776 = vst.msk [vmem:[%s9] sm:$0xff] %vm775, %v669
    %777 = vst.msk [vmem:[%s9 + $0x8] sm:$0xff] %vm775, %v684
    %778 = vst.msk [vmem:[%s9 + $0x10] sm:$0xff] %vm775, %v699
    %779 = vst.msk [vmem:[%s9 + $0x18] sm:$0xff] %vm775, %v714
    %780 = vst.msk [vmem:[%s9 + $0x20] sm:$0xff] %vm775, %v729
    %781 = vst.msk [vmem:[%s9 + $0x28] sm:$0xff] %vm775, %v744
    %782 = vst.msk [vmem:[%s9 + $0x30] sm:$0xff] %vm775, %v759
    %783 = vst.msk [vmem:[%s9 + $0x38] sm:$0xff] %vm775, %v774
    // Predicated region
    $region42: #{tpu_custom_call.1} parent=1 // pred_check
      _
    $region43: #{tpu_custom_call.1} parent=1 // pred_check_branch
      %785 = sbr.rel (0) target = $region45
    $region44: #{tpu_custom_call.1} parent=1 // pred_region
      _
    $region45: #{tpu_custom_call.1} parent=1 // pred_fallthru
      _
    // Predicated region
    $region46: #{tpu_custom_call.1} parent=1 // pred_check
      _
    $region47: #{tpu_custom_call.1} parent=1 // pred_check_branch
      %787 = sbr.rel (0) target = $region49
    $region48: #{tpu_custom_call.1} parent=1 // pred_region
      _
    $region49: #{tpu_custom_call.1} parent=1 // pred_fallthru
      _
    %788 = vsyncpa [#allocation3], 1

</llo_original>
